<compile_context>
chip_gen: v6e
topology: v6e:2x2x1
jax: 0.10.0
libtpu: 0.0.40
codegen_flags: <defaults>
</compile_context>

<pallas_src>
import functools

import jax
import jax.numpy as jnp
from jax.experimental import pallas as pl
from jax.experimental.pallas import tpu as pltpu


# ---------------------------------------------------------------------------
# Squeeze-excite gate (pure jnp: usable inside a kernel and in host JAX)
# ---------------------------------------------------------------------------

def _se_gate(pooled_f32, w1, b1, w2, b2):
    """sigmoid(W2 @ relu(W1 @ pooled + b1) + b2) on the VPU (no MXU).

    pooled_f32: (NB, C) f32; w1: (C_mid, C); b1: (1, C_mid); w2: (C, C_mid);
    b2: (1, C).  Returns (NB, C) f32 in (0, 1).
    """
    w1 = w1.astype(jnp.float32)
    b1 = b1.astype(jnp.float32)
    w2 = w2.astype(jnp.float32)
    b2 = b2.astype(jnp.float32)
    # 1x1 conv C -> C_mid as broadcast-multiply + lane reduction (VPU/XLU).
    h = jnp.sum(pooled_f32[:, None, :] * w1[None, :, :], axis=-1) + b1  # (NB,Cm)
    h = jnp.maximum(h, 0.0)                                             # ReLU
    # 1x1 conv C_mid -> C
    z = jnp.sum(h[:, None, :] * w2[None, :, :], axis=-1) + b2           # (NB, C)
    return 1.0 / (1.0 + jnp.exp(-z))                                    # Sigmoid


# ---------------------------------------------------------------------------
# Kernels
# ---------------------------------------------------------------------------

def _ca_fused_kernel(x_ref, w1_ref, b1_ref, w2_ref, b2_ref, o_ref):
    """Single pass: pool + SE + scale on a (NB, C, HW) block."""
    x = x_ref[...]                                                # native dtype
    inv_hw = jnp.float32(1.0 / x.shape[-1])
    pooled = jnp.sum(x.astype(jnp.float32), axis=-1) * inv_hw     # (NB, C)
    y = _se_gate(pooled, w1_ref[...], b1_ref[...], w2_ref[...], b2_ref[...])
    o_ref[...] = x * y[:, :, None].astype(x.dtype)


def _ca_pool_kernel(x_ref, part_ref, *, hw_total, tile, needs_mask):
    """Pass A: per-(batch-block, HW-tile) partial channel sums (fully parallel)."""
    x = x_ref[...].astype(jnp.float32)                            # (NB, C, T)
    if needs_mask:
        j = pl.program_id(1)
        lane = jax.lax.broadcasted_iota(jnp.int32, x.shape, dimension=2)
        x = jnp.where(lane < (hw_total - j * tile), x, 0.0)
    part_ref[0] = jnp.sum(x, axis=-1)                             # (NB, C)


def _ca_scale_kernel(y_ref, x_ref, o_ref):
    """Pass B: channel-wise re-scale of a (NB, C, T) tile."""
    x = x_ref[...]
    o_ref[...] = x * y_ref[...][:, :, None].astype(x.dtype)


# ---------------------------------------------------------------------------
# Host-side helpers
# ---------------------------------------------------------------------------

def _cdiv(a, b):
    return -(-a // b)


def _tpu_vmem_capacity_bytes():
    try:
        info = pltpu.get_tpu_info()
        cap = getattr(info, "vmem_capacity_bytes", None)
        if cap:
            return int(cap)
    except Exception:
        pass
    return 64 << 20  # conservative fallback (v7x per-TC)


def _budgets(itemsize):
    """(per-step block budget bytes, scoped-VMEM cap bytes), generation aware."""
    cap = _tpu_vmem_capacity_bytes()
    if cap >= (128 << 20):          # v5e / v6e: 128 MiB physical VMEM
        vmem_cap = 96 << 20
        step_cap = 16 << 20
    else:                           # v7x: 64 MiB per TensorCore
        vmem_cap = 48 << 20
        step_cap = 8 << 20
    slack = 4 << 20
    # Per grid step: 2x double-buffered input block + 2x double-buffered
    # output block + (for sub-32-bit x) one f32 temporary of the block from
    # the cast feeding the HW reduction.
    denom = 4.0 + ((4.0 / itemsize) if itemsize < 4 else 0.0)
    max_block = int((vmem_cap - slack) / denom)
    return min(max_block, step_cap), vmem_cap


def _vmem_limit_bytes(block_bytes, itemsize, vmem_cap):
    f32_temp = 0 if itemsize >= 4 else (block_bytes // itemsize) * 4
    need = 4 * block_bytes + f32_temp + (4 << 20)
    return int(min(max(need, 16 << 20), vmem_cap))


def _pick_fused_batch_block(n, per_image_bytes, max_block_bytes):
    nb_budget = max(1, int(max_block_bytes // per_image_bytes))
    nb_min = max(1, _cdiv(1 << 20, per_image_bytes))   # keep blocks >= ~1 MiB
    nb_steps = max(1, n // min(n, 4))                  # keep >= ~4 grid steps
    return min(nb_budget, max(nb_min, nb_steps), n)


def _pick_hw_tile(hw, nb, c, itemsize, max_block_bytes):
    """Largest multiple-of-128 tile <= budget and <= hw (ragged last tile OK)."""
    if hw < 128:
        return hw
    t_budget = (int(max_block_bytes // max(1, nb * c * itemsize)) // 128) * 128
    t_budget = max(128, t_budget)
    return max(128, min(t_budget, (hw // 128) * 128))


# ---------------------------------------------------------------------------
# Public wrapper
# ---------------------------------------------------------------------------

def ca_layer(x, w1, b1, w2, b2, *, max_block_bytes=None, donate_x=False):
    """Channel attention: x * sigmoid(W2 @ relu(W1 @ avgpool(x) + b1) + b2).

    x: (N, C, H, W); w1: (C//r, C); b1: (C//r,); w2: (C, C//r); b2: (C,)
    """
    N, C, H, W = x.shape
    HW = H * W
    C_mid = w1.shape[0]
    itemsize = jnp.dtype(x.dtype).itemsize

    auto_block, vmem_cap = _budgets(itemsize)
    if max_block_bytes is None:
        max_block_bytes = auto_block

    x_flat = x.reshape(N, C, HW)
    b1_2d = b1.reshape(1, C_mid)
    b2_2d = b2.reshape(1, C)

    per_image_bytes = C * HW * itemsize

    if per_image_bytes <= max_block_bytes:
        # ------------------ fused single pass (2x traffic) ------------------
        NB = _pick_fused_batch_block(N, per_image_bytes, max_block_bytes)
        grid = (_cdiv(N, NB),)
        block_bytes = NB * per_image_bytes
        weight_specs = [
            pl.BlockSpec((C_mid, C), lambda n: (0, 0)),
            pl.BlockSpec((1, C_mid), lambda n: (0, 0)),
            pl.BlockSpec((C, C_mid), lambda n: (0, 0)),
            pl.BlockSpec((1, C), lambda n: (0, 0)),
        ]
        cost = pl.CostEstimate(
            flops=int(2 * N * C * HW + 4 * N * C * C_mid),
            transcendentals=int(N * C),
            bytes_accessed=int(2 * N * C * HW * itemsize),
        )
        out_flat = pl.pallas_call(
            _ca_fused_kernel,
            out_shape=jax.ShapeDtypeStruct((N, C, HW), x.dtype),
            grid_spec=pltpu.PrefetchScalarGridSpec(
                num_scalar_prefetch=0,
                grid=grid,
                in_specs=[pl.BlockSpec((NB, C, HW), lambda n: (n, 0, 0))]
                         + weight_specs,
                out_specs=pl.BlockSpec((NB, C, HW), lambda n: (n, 0, 0)),
            ),
            compiler_params=pltpu.CompilerParams(
                dimension_semantics=("parallel",),
                vmem_limit_bytes=_vmem_limit_bytes(block_bytes, itemsize,
                                                   vmem_cap),
            ),
            cost_estimate=cost,
            input_output_aliases=({0: 0} if donate_x else {}),
        )(x_flat, w1, b1_2d, w2, b2_2d)
        return out_flat.reshape(N, C, H, W)

    # -------------- two-pass spatial tiling (3x traffic, large HW) ----------
    # Gate / partial blocks are (NB, C): sublane dim NB must be a multiple of
    # 8 or the full batch.
    NB = N if N < 8 else 8
    T = _pick_hw_tile(HW, NB, C, itemsize, max_block_bytes)
    n_hw = _cdiv(HW, T)
    grid = (_cdiv(N, NB), n_hw)
    block_bytes = NB * C * T * itemsize
    vmem_limit = _vmem_limit_bytes(block_bytes, itemsize, vmem_cap)

    # Pass A: partial channel sums per HW tile on a fully parallel grid
    # (keeps both v7x TensorCores busy even for tiny N).  Ragged last tile is
    # masked in-kernel, so HW need not be a multiple of 128.
    cost_a = pl.CostEstimate(
        flops=int(N * C * HW),
        transcendentals=0,
        bytes_accessed=int(N * C * HW * itemsize + n_hw * N * C * 4),
    )
    part = pl.pallas_call(
        functools.partial(_ca_pool_kernel, hw_total=HW, tile=T,
                          needs_mask=(HW % T) != 0),
        out_shape=jax.ShapeDtypeStruct((n_hw, N, C), jnp.float32),
        grid_spec=pltpu.PrefetchScalarGridSpec(
            num_scalar_prefetch=0,
            grid=grid,
            in_specs=[pl.BlockSpec((NB, C, T), lambda i, j: (i, 0, j))],
            out_specs=pl.BlockSpec((1, NB, C), lambda i, j: (j, i, 0)),
        ),
        compiler_params=pltpu.CompilerParams(
            dimension_semantics=("parallel", "parallel"),
            vmem_limit_bytes=vmem_limit,
        ),
        cost_estimate=cost_a,
    )(x_flat)

    # Tiny (N, C) squeeze-excite gate finished in plain JAX (orders of
    # magnitude below the streaming cost of x).
    pooled = jnp.sum(part, axis=0) * jnp.float32(1.0 / HW)          # (N, C)
    gate = _se_gate(pooled, w1, b1_2d, w2, b2_2d)                   # (N, C) f32

    # Pass B: channel-wise re-scale, fully parallel grid, lane-dense stores
    # (T is a multiple of 128); ragged-tile overflow writes are dropped.
    cost_b = pl.CostEstimate(
        flops=int(N * C * HW),
        transcendentals=0,
        bytes_accessed=int(2 * N * C * HW * itemsize + N * C * 4),
    )
    out_flat = pl.pallas_call(
        _ca_scale_kernel,
        out_shape=jax.ShapeDtypeStruct((N, C, HW), x.dtype),
        grid_spec=pltpu.PrefetchScalarGridSpec(
            num_scalar_prefetch=0,
            grid=grid,
            in_specs=[
                pl.BlockSpec((NB, C), lambda i, j: (i, 0)),
                pl.BlockSpec((NB, C, T), lambda i, j: (i, 0, j)),
            ],
            out_specs=pl.BlockSpec((NB, C, T), lambda i, j: (i, 0, j)),
        ),
        compiler_params=pltpu.CompilerParams(
            dimension_semantics=("parallel", "parallel"),
            vmem_limit_bytes=vmem_limit,
        ),
        cost_estimate=cost_b,
        input_output_aliases=({1: 0} if donate_x else {}),
    )(gate, x_flat)
    return out_flat.reshape(N, C, H, W)


# ---------------------------------------------------------------------------
# Pure-JAX reference (mirrors the PyTorch forward)
# ---------------------------------------------------------------------------

def ca_layer_ref(x, w1, b1, w2, b2):
    y = jnp.mean(x, axis=(2, 3), keepdims=True)                       # (N,C,1,1)
    h = jnp.einsum('oc,ncij->noij', w1, y) + b1[None, :, None, None]
    h = jnp.maximum(h, 0.0)
    y = jnp.einsum('oc,ncij->noij', w2, h) + b2[None, :, None, None]
    y = jax.nn.sigmoid(y)
    return x * y


if __name__ == "__main__":
    key = jax.random.PRNGKey(0)

    def make_case(k, N, C, H, W, reduction):
        C_mid = max(1, C // reduction)
        kx, k1, k2, k3, k4 = jax.random.split(k, 5)
        x = jax.random.normal(kx, (N, C, H, W), dtype=jnp.float32)
        w1 = jax.random.normal(k1, (C_mid, C), dtype=jnp.float32) * 0.1
        b1 = jax.random.normal(k2, (C_mid,), dtype=jnp.float32) * 0.1
        w2 = jax.random.normal(k3, (C, C_mid), dtype=jnp.float32) * 0.1
        b2 = jax.random.normal(k4, (C,), dtype=jnp.float32) * 0.1
        return x, w1, b1, w2, b2

    ka, kb, kc = jax.random.split(key, 3)

    # Case 1: module config channel=32, reduction=16 -> fused single-pass path.
    args1 = make_case(ka, N=2, C=32, H=16, W=16, reduction=16)
    out1 = jax.block_until_ready(ca_layer(*args1))
    ref1 = jax.block_until_ready(ca_layer_ref(*args1))
    assert out1.shape == args1[0].shape and out1.dtype == args1[0].dtype
    assert jnp.allclose(out1, ref1, atol=1e-5, rtol=1e-5), "fused path mismatch"

    # Case 2: force the two-pass spatially-tiled path (128-aligned HW).
    args2 = make_case(kb, N=2, C=32, H=32, W=32, reduction=16)
    out2 = jax.block_until_ready(ca_layer(*args2, max_block_bytes=64 * 1024))
    ref2 = jax.block_until_ready(ca_layer_ref(*args2))
    assert out2.shape == args2[0].shape and out2.dtype == args2[0].dtype
    assert jnp.allclose(out2, ref2, atol=1e-5, rtol=1e-5), "two-pass mismatch"

    # Case 3: two-pass path with ragged HW (H*W = 400, not a multiple of 128):
    # exercises the cdiv tiling + masked partial-sum path.
    args3 = make_case(kc, N=2, C=32, H=20, W=20, reduction=16)
    out3 = jax.block_until_ready(ca_layer(*args3, max_block_bytes=32 * 1024))
    ref3 = jax.block_until_ready(ca_layer_ref(*args3))
    assert out3.shape == args3[0].shape and out3.dtype == args3[0].dtype
    assert jnp.allclose(out3, ref3, atol=1e-5, rtol=1e-5), "ragged-HW mismatch"

    print("KERNEL_OK")
</pallas_src>

<mosaic_0001>
module attributes {stable_mosaic.version = 11 : i64} {
  func.func @_ca_fused_kernel(%arg0: i32, %arg1: memref<2x32x256xf32, #tpu.memory_space<vmem>>, %arg2: memref<2x32xf32, #tpu.memory_space<vmem>>, %arg3: memref<1x2xf32, #tpu.memory_space<vmem>>, %arg4: memref<32x2xf32, #tpu.memory_space<vmem>>, %arg5: memref<1x32xf32, #tpu.memory_space<vmem>>, %arg6: memref<2x32x256xf32, #tpu.memory_space<vmem>>) attributes {dimension_semantics = [#tpu.dimension_semantics<parallel>], iteration_bounds = array<i64: 1>, scalar_prefetch = 0 : i64, scratch_operands = 0 : i64, tpu.core_type = #tpu.core_type<tc>, window_params = [{transform_indices = @transform_0, window_bounds = array<i64: 2, 32, 256>}, {pipeline_mode = #tpu.pipeline_mode<synchronous>, transform_indices = @transform_1, window_bounds = array<i64: 2, 32>}, {pipeline_mode = #tpu.pipeline_mode<synchronous>, transform_indices = @transform_2, window_bounds = array<i64: 1, 2>}, {pipeline_mode = #tpu.pipeline_mode<synchronous>, transform_indices = @transform_3, window_bounds = array<i64: 32, 2>}, {pipeline_mode = #tpu.pipeline_mode<synchronous>, transform_indices = @transform_4, window_bounds = array<i64: 1, 32>}, {transform_indices = @transform_5, window_bounds = array<i64: 2, 32, 256>}]} {
    %c0 = arith.constant 0 : index
    %c0_0 = arith.constant 0 : index
    %c0_1 = arith.constant 0 : index
    %0 = vector.load %arg1[%c0, %c0_0, %c0_1] : memref<2x32x256xf32, #tpu.memory_space<vmem>>, vector<2x32x256xf32>
    %cst = arith.constant dense<0.000000e+00> : vector<2x32xf32>
    %1 = vector.multi_reduction <add>, %0, %cst [2] : vector<2x32x256xf32> to vector<2x32xf32>
    %cst_2 = arith.constant 3.906250e-03 : f32
    %2 = vector.broadcast %cst_2 : f32 to vector<2x32xf32>
    %3 = arith.mulf %1, %2 : vector<2x32xf32>
    %c0_3 = arith.constant 0 : index
    %c0_4 = arith.constant 0 : index
    %4 = vector.load %arg2[%c0_3, %c0_4] : memref<2x32xf32, #tpu.memory_space<vmem>>, vector<2x32xf32>
    %c0_5 = arith.constant 0 : index
    %c0_6 = arith.constant 0 : index
    %5 = vector.load %arg3[%c0_5, %c0_6] : memref<1x2xf32, #tpu.memory_space<vmem>>, vector<1x2xf32>
    %c0_7 = arith.constant 0 : index
    %c0_8 = arith.constant 0 : index
    %6 = vector.load %arg4[%c0_7, %c0_8] : memref<32x2xf32, #tpu.memory_space<vmem>>, vector<32x2xf32>
    %c0_9 = arith.constant 0 : index
    %c0_10 = arith.constant 0 : index
    %7 = vector.load %arg5[%c0_9, %c0_10] : memref<1x32xf32, #tpu.memory_space<vmem>>, vector<1x32xf32>
    %8 = vector.shape_cast %3 : vector<2x32xf32> to vector<2x1x32xf32>
    %9 = vector.shape_cast %4 : vector<2x32xf32> to vector<1x2x32xf32>
    %10 = vector.broadcast %8 : vector<2x1x32xf32> to vector<2x2x32xf32>
    %11 = vector.broadcast %9 : vector<1x2x32xf32> to vector<2x2x32xf32>
    %12 = arith.mulf %10, %11 : vector<2x2x32xf32>
    %cst_11 = arith.constant dense<0.000000e+00> : vector<2x2xf32>
    %13 = vector.multi_reduction <add>, %12, %cst_11 [2] : vector<2x2x32xf32> to vector<2x2xf32>
    %14 = vector.broadcast %5 : vector<1x2xf32> to vector<2x2xf32>
    %15 = arith.addf %13, %14 : vector<2x2xf32>
    %cst_12 = arith.constant 0.000000e+00 : f32
    %16 = vector.broadcast %cst_12 : f32 to vector<2x2xf32>
    %17 = arith.maximumf %15, %16 : vector<2x2xf32>
    %18 = vector.shape_cast %17 : vector<2x2xf32> to vector<2x1x2xf32>
    %19 = vector.shape_cast %6 : vector<32x2xf32> to vector<1x32x2xf32>
    %20 = vector.broadcast %18 : vector<2x1x2xf32> to vector<2x32x2xf32>
    %21 = vector.broadcast %19 : vector<1x32x2xf32> to vector<2x32x2xf32>
    %22 = arith.mulf %20, %21 : vector<2x32x2xf32>
    %cst_13 = arith.constant dense<0.000000e+00> : vector<2x32xf32>
    %23 = vector.multi_reduction <add>, %22, %cst_13 [2] : vector<2x32x2xf32> to vector<2x32xf32>
    %24 = vector.broadcast %7 : vector<1x32xf32> to vector<2x32xf32>
    %25 = arith.addf %23, %24 : vector<2x32xf32>
    %cst_14 = arith.constant 0.000000e+00 : f32
    %26 = vector.broadcast %cst_14 : f32 to vector<2x32xf32>
    %27 = arith.subf %26, %25 : vector<2x32xf32>
    %28 = math.exp %27 : vector<2x32xf32>
    %cst_15 = arith.constant 1.000000e+00 : f32
    %29 = vector.broadcast %cst_15 : f32 to vector<2x32xf32>
    %30 = arith.addf %29, %28 : vector<2x32xf32>
    %cst_16 = arith.constant 1.000000e+00 : f32
    %31 = vector.broadcast %cst_16 : f32 to vector<2x32xf32>
    %32 = arith.divf %31, %30 : vector<2x32xf32>
    %33 = vector.shape_cast %32 : vector<2x32xf32> to vector<2x32x1xf32>
    %34 = vector.broadcast %33 : vector<2x32x1xf32> to vector<2x32x256xf32>
    %35 = arith.mulf %0, %34 : vector<2x32x256xf32>
    %c0_17 = arith.constant 0 : index
    %c0_18 = arith.constant 0 : index
    %c0_19 = arith.constant 0 : index
    %36 = vector.load %arg6[%c0_17, %c0_18, %c0_19] : memref<2x32x256xf32, #tpu.memory_space<vmem>>, vector<2x32x256xf32>
    tpu.vector_store %arg6[%c0_17, %c0_18, %c0_19], %35 {strides = array<i32>} : memref<2x32x256xf32, #tpu.memory_space<vmem>>, vector<2x32x256xf32>,
    return
  }
  func.func @transform_0(%arg0: i32) -> (i32, i32, i32) {
    %c0_i32 = arith.constant 0 : i32
    %c0_i32_0 = arith.constant 0 : i32
    %c0_i32_1 = arith.constant 0 : i32
    return %arg0, %c0_i32, %c0_i32_0 : i32, i32, i32
  }
  func.func @transform_1(%arg0: i32) -> (i32, i32) {
    %c0_i32 = arith.constant 0 : i32
    %c0_i32_0 = arith.constant 0 : i32
    %c0_i32_1 = arith.constant 0 : i32
    return %c0_i32, %c0_i32_0 : i32, i32
  }
  func.func @transform_2(%arg0: i32) -> (i32, i32) {
    %c0_i32 = arith.constant 0 : i32
    %c0_i32_0 = arith.constant 0 : i32
    %c0_i32_1 = arith.constant 0 : i32
    return %c0_i32, %c0_i32_0 : i32, i32
  }
  func.func @transform_3(%arg0: i32) -> (i32, i32) {
    %c0_i32 = arith.constant 0 : i32
    %c0_i32_0 = arith.constant 0 : i32
    %c0_i32_1 = arith.constant 0 : i32
    return %c0_i32, %c0_i32_0 : i32, i32
  }
  func.func @transform_4(%arg0: i32) -> (i32, i32) {
    %c0_i32 = arith.constant 0 : i32
    %c0_i32_0 = arith.constant 0 : i32
    %c0_i32_1 = arith.constant 0 : i32
    return %c0_i32, %c0_i32_0 : i32, i32
  }
  func.func @transform_5(%arg0: i32) -> (i32, i32, i32) {
    %c0_i32 = arith.constant 0 : i32
    %c0_i32_0 = arith.constant 0 : i32
    %c0_i32_1 = arith.constant 0 : i32
    return %arg0, %c0_i32, %c0_i32_0 : i32, i32, i32
  }
}

</mosaic_0001>

<llo_original>
// kernel: tpu_custom_call.1
$region0: #{tpu_custom_call.1}
  #allocation0 [shape = 'u32[]', space=smem, size = 0x4, offset = 0x4, fixed_abs, tag = 'smem constant byte address 0x4 - core index']
  #allocation1 [shape = 'u32[144,128]{1,0:T(1,128)}', space=vmem, size = 0x12000, scoped, tag = 'internal scratch']
  %s0 = inlined_call_operand.hbm [shape: f32[2,32,256], index: 0, kind: input, shape index: {}]
  %s1 = inlined_call_operand.vmem [shape: f32[2,32], index: 1, kind: input, shape index: {}]
  %s2 = inlined_call_operand.vmem [shape: f32[1,2], index: 2, kind: input, shape index: {}]
  %s3 = inlined_call_operand.vmem [shape: f32[32,2], index: 3, kind: input, shape index: {}]
  %s4 = inlined_call_operand.vmem [shape: f32[1,32], index: 4, kind: input, shape index: {}]
  %s5 = inlined_call_operand.hbm [shape: f32[2,32,256], index: 5, kind: output, shape index: {}]
  %s6 = sld [smem:[#allocation0]]
  $region34: #{tpu_custom_call.1} parent=0
    _
  %s8 = ssub.s32 1, %s6
  %s9 = scalar_select 0, %s8, %s6
  $region1: #{tpu_custom_call.1} parent=0
    #allocation2 [shape = 'u8[65536]{0}', space=vmem, size = 0x10000, scoped, tag = 'input window, operand 0, single buffered']
    #allocation3 [shape = 's32[1]{0}', space=sflag, size = 0x4, scoped, tag = 'scoped memory for tpu_custom_call.1']
    #allocation4 [shape = 's32[1]{0}', space=sflag, size = 0x4, scoped, tag = 'scoped memory for tpu_custom_call.1']
    #allocation5 [shape = 'u8[65536]{0}', space=vmem, size = 0x10000, scoped, tag = 'output window, operand 0, single buffered']
    %10 = vsyncpa [#allocation3], 0
    %11 = vsyncpa [#allocation4], 0
    // Predicated region
    $region2: #{tpu_custom_call.1} parent=1 // pred_check
      _
    $region3: #{tpu_custom_call.1} parent=1 // pred_check_branch
      %13 = sbr.rel (0) target = $region5
    $region4: #{tpu_custom_call.1} parent=1 // pred_region
      %s15 = ssub.s32 2048, 2048
      %16 = vsyncadd [#allocation3], %s15
      %s17 = sshll.u32 [#allocation2], 4
      %s18 = int_to_ptr.vmem [resolvable:$true] %s17
      %23 = dma.hbm_to_vmem [thread:$0]  %s0, 2048, %s18, [#allocation3], 256, 256, 16
    $region5: #{tpu_custom_call.1} parent=1 // pred_fallthru
      _
    // Predicated region
    $region6: #{tpu_custom_call.1} parent=1 // pred_check
      _
    $region7: #{tpu_custom_call.1} parent=1 // pred_check_branch
      %25 = sbr.rel (0) target = $region9
    $region8: #{tpu_custom_call.1} parent=1 // pred_region
      _
    $region9: #{tpu_custom_call.1} parent=1 // pred_fallthru
      _
    // Predicated region
    $region10: #{tpu_custom_call.1} parent=1 // pred_check
      _
    $region11: #{tpu_custom_call.1} parent=1 // pred_check_branch
      %27 = sbr.rel (0) target = $region13
    $region12: #{tpu_custom_call.1} parent=1 // pred_region
      _
    $region13: #{tpu_custom_call.1} parent=1 // pred_fallthru
      _
    // Predicated region
    $region14: #{tpu_custom_call.1} parent=1 // pred_check
      _
    $region15: #{tpu_custom_call.1} parent=1 // pred_check_branch
      %29 = sbr.rel (0) target = $region17
    $region16: #{tpu_custom_call.1} parent=1 // pred_region
      _
    $region17: #{tpu_custom_call.1} parent=1 // pred_fallthru
      _
    // Predicated region
    $region18: #{tpu_custom_call.1} parent=1 // pred_check
      _
    $region19: #{tpu_custom_call.1} parent=1 // pred_check_branch
      %31 = sbr.rel (0) target = $region21
    $region20: #{tpu_custom_call.1} parent=1 // pred_region
      _
    $region21: #{tpu_custom_call.1} parent=1 // pred_fallthru
      _
    // Predicated region
    $region22: #{tpu_custom_call.1} parent=1 // pred_check
      _
    $region23: #{tpu_custom_call.1} parent=1 // pred_check_branch
      %33 = sbr.rel (0) target = $region25
    $region24: #{tpu_custom_call.1} parent=1 // pred_region
      %34 = dma.done [#allocation3], 2048
    $region25: #{tpu_custom_call.1} parent=1 // pred_fallthru
      _
    %v35 = vld [vmem:[#allocation2] sm:$0xff]
    %v36 = vld [vmem:[#allocation2 + $0x8] sm:$0xff]
    %v37 = vld [vmem:[#allocation2 + $0x10] sm:$0xff]
    %v38 = vld [vmem:[#allocation2 + $0x18] sm:$0xff]
    %v39 = vld [vmem:[#allocation2 + $0x20] sm:$0xff]
    %v40 = vld [vmem:[#allocation2 + $0x28] sm:$0xff]
    %v41 = vld [vmem:[#allocation2 + $0x30] sm:$0xff]
    %v42 = vld [vmem:[#allocation2 + $0x38] sm:$0xff]
    %v43 = vld [vmem:[#allocation2 + $0x40] sm:$0xff]
    %v44 = vld [vmem:[#allocation2 + $0x48] sm:$0xff]
    %v45 = vld [vmem:[#allocation2 + $0x50] sm:$0xff]
    %v46 = vld [vmem:[#allocation2 + $0x58] sm:$0xff]
    %v47 = vld [vmem:[#allocation2 + $0x60] sm:$0xff]
    %v48 = vld [vmem:[#allocation2 + $0x68] sm:$0xff]
    %v49 = vld [vmem:[#allocation2 + $0x70] sm:$0xff]
    %v50 = vld [vmem:[#allocation2 + $0x78] sm:$0xff]
    %v51 = vadd.f32 %v35, %v36
    %52 = vadd.xlane.f32.xlu0 %v51
    %v53 = vpop.xlane.xlu0 %52
    %v54 = vadd.f32 %v37, %v38
    %55 = vadd.xlane.f32.xlu0 %v54
    %v56 = vpop.xlane.xlu0 %55
    %v57 = vadd.f32 %v39, %v40
    %58 = vadd.xlane.f32.xlu0 %v57
    %v59 = vpop.xlane.xlu0 %58
    %v60 = vadd.f32 %v41, %v42
    %61 = vadd.xlane.f32.xlu0 %v60
    %v62 = vpop.xlane.xlu0 %61
    %v63 = vadd.f32 %v43, %v44
    %64 = vadd.xlane.f32.xlu0 %v63
    %v65 = vpop.xlane.xlu0 %64
    %v66 = vadd.f32 %v45, %v46
    %67 = vadd.xlane.f32.xlu0 %v66
    %v68 = vpop.xlane.xlu0 %67
    %v69 = vadd.f32 %v47, %v48
    %70 = vadd.xlane.f32.xlu0 %v69
    %v71 = vpop.xlane.xlu0 %70
    %v72 = vadd.f32 %v49, %v50
    %73 = vadd.xlane.f32.xlu0 %v72
    %v74 = vpop.xlane.xlu0 %73
    %v75 = vmul.f32 %v53, 0.00390625
    %v76 = vmul.f32 %v56, 0.00390625
    %v77 = vmul.f32 %v59, 0.00390625
    %v78 = vmul.f32 %v62, 0.00390625
    %v79 = vmul.f32 %v65, 0.00390625
    %v80 = vmul.f32 %v68, 0.00390625
    %v81 = vmul.f32 %v71, 0.00390625
    %v82 = vmul.f32 %v74, 0.00390625
    %v83 = vld [vmem:[%s1] sm:$0x3]
    %v84 = vld [vmem:[%s2] sm:$0x1]
    %v85 = vld [vmem:[%s3] sm:$0xff]
    %v86 = vld [vmem:[%s3 + $0x8] sm:$0xff]
    %v87 = vld [vmem:[%s3 + $0x10] sm:$0xff]
    %v88 = vld [vmem:[%s3 + $0x18] sm:$0xff]
    %v89 = vld [vmem:[%s4] sm:$0x1]
    %v91 = vlaneseq
    %v92 = vshrl.u32 %v91, 7
    %v93 = vsub.s32 0, %v92
    %v94 = vrot.slane %v83, %v93
    %96 = vbcast.lane.b32.xlu0 %v94, 256
    %v97 = vpop.permute.xlu0 %96
    %s99 = sor.u32 256, 8
    %100 = vbcast.lane.b32.xlu0 %v94, %s99
    %v101 = vpop.permute.xlu0 %100
    %s103 = sor.u32 256, 16
    %104 = vbcast.lane.b32.xlu0 %v94, %s103
    %v105 = vpop.permute.xlu0 %104
    %s107 = sor.u32 256, 24
    %108 = vbcast.lane.b32.xlu0 %v94, %s107
    %v109 = vpop.permute.xlu0 %108
    %v110 = vlaneseq
    %v111 = vshrl.u32 %v110, 7
    %v112 = vsub.s32 1, %v111
    %v113 = vrot.slane %v83, %v112
    %115 = vbcast.lane.b32.xlu0 %v113, 256
    %v116 = vpop.permute.xlu0 %115
    %s118 = sor.u32 256, 8
    %119 = vbcast.lane.b32.xlu0 %v113, %s118
    %v120 = vpop.permute.xlu0 %119
    %s122 = sor.u32 256, 16
    %123 = vbcast.lane.b32.xlu0 %v113, %s122
    %v124 = vpop.permute.xlu0 %123
    %s126 = sor.u32 256, 24
    %127 = vbcast.lane.b32.xlu0 %v113, %s126
    %v128 = vpop.permute.xlu0 %127
    %v137 = vmul.f32 %v75, %v97
    %v138 = vmul.f32 %v76, %v101
    %v139 = vmul.f32 %v77, %v105
    %v140 = vmul.f32 %v78, %v109
    %v141 = vmul.f32 %v75, %v116
    %v142 = vmul.f32 %v76, %v120
    %v143 = vmul.f32 %v77, %v124
    %v144 = vmul.f32 %v78, %v128
    %v145 = vmul.f32 %v79, %v97
    %v146 = vmul.f32 %v80, %v101
    %v147 = vmul.f32 %v81, %v105
    %v148 = vmul.f32 %v82, %v109
    %v149 = vmul.f32 %v79, %v116
    %v150 = vmul.f32 %v80, %v120
    %v151 = vmul.f32 %v81, %v124
    %v152 = vmul.f32 %v82, %v128
    %169 = vset.pattern.permute.xlu0 0
    %170 = vperm.xlu0 %169, %v137
    %v171 = vpop.permute.xlu0 %170
    %172 = vset.pattern.permute.xlu0 0
    %173 = vperm.xlu0 %172, %v138
    %v174 = vpop.permute.xlu0 %173
    %175 = vset.pattern.permute.xlu0 0
    %176 = vperm.xlu0 %175, %v139
    %v177 = vpop.permute.xlu0 %176
    %178 = vset.pattern.permute.xlu0 0
    %179 = vperm.xlu0 %178, %v140
    %v180 = vpop.permute.xlu0 %179
    %181 = vset.pattern.permute.xlu0 0
    %182 = vperm.xlu0 %181, %v141
    %v183 = vpop.permute.xlu0 %182
    %184 = vset.pattern.permute.xlu0 0
    %185 = vperm.xlu0 %184, %v142
    %v186 = vpop.permute.xlu0 %185
    %187 = vset.pattern.permute.xlu0 0
    %188 = vperm.xlu0 %187, %v143
    %v189 = vpop.permute.xlu0 %188
    %190 = vset.pattern.permute.xlu0 0
    %191 = vperm.xlu0 %190, %v144
    %v192 = vpop.permute.xlu0 %191
    %193 = vset.pattern.permute.xlu0 0
    %194 = vperm.xlu0 %193, %v145
    %v195 = vpop.permute.xlu0 %194
    %196 = vset.pattern.permute.xlu0 0
    %197 = vperm.xlu0 %196, %v146
    %v198 = vpop.permute.xlu0 %197
    %199 = vset.pattern.permute.xlu0 0
    %200 = vperm.xlu0 %199, %v147
    %v201 = vpop.permute.xlu0 %200
    %202 = vset.pattern.permute.xlu0 0
    %203 = vperm.xlu0 %202, %v148
    %v204 = vpop.permute.xlu0 %203
    %205 = vset.pattern.permute.xlu0 0
    %206 = vperm.xlu0 %205, %v149
    %v207 = vpop.permute.xlu0 %206
    %208 = vset.pattern.permute.xlu0 0
    %209 = vperm.xlu0 %208, %v150
    %v210 = vpop.permute.xlu0 %209
    %211 = vset.pattern.permute.xlu0 0
    %212 = vperm.xlu0 %211, %v151
    %v213 = vpop.permute.xlu0 %212
    %214 = vset.pattern.permute.xlu0 0
    %215 = vperm.xlu0 %214, %v152
    %v216 = vpop.permute.xlu0 %215
    %v217 = vlaneseq
    %v218 = vand.u32 %v217, 127
    %v219 = vlaneseq
    %v220 = vshrl.u32 %v219, 7
    %v221 = vsub.s32 %v218, %v220
    %v222 = vrot.slane %v171, %v221
    %v223 = vadd.s32 %v218, 4294967288
    %v224 = vlaneseq
    %v225 = vshrl.u32 %v224, 7
    %v226 = vsub.s32 %v223, %v225
    %v227 = vrot.slane %v174, %v226
    %vm228 = vcmask 130112
    %v229 = vsel %vm228, %v227, %v222
    %v230 = vadd.s32 %v218, 4294967280
    %v231 = vlaneseq
    %v232 = vshrl.u32 %v231, 7
    %v233 = vsub.s32 %v230, %v232
    %v234 = vrot.slane %v177, %v233
    %vm235 = vcmask 195712
    %v236 = vsel %vm235, %v234, %v229
    %v237 = vadd.s32 %v218, 4294967272
    %v238 = vlaneseq
    %v239 = vshrl.u32 %v238, 7
    %v240 = vsub.s32 %v237, %v239
    %v241 = vrot.slane %v180, %v240
    %vm242 = vcmask 261312
    %v243 = vsel %vm242, %v241, %v236
    %v244 = vlaneseq
    %v245 = vshrl.u32 %v244, 7
    %v246 = vsub.s32 %v218, %v245
    %v247 = vrot.slane %v183, %v246
    %v248 = vlaneseq
    %v249 = vshrl.u32 %v248, 7
    %v250 = vsub.s32 %v223, %v249
    %v251 = vrot.slane %v186, %v250
    %v252 = vsel %vm228, %v251, %v247
    %v253 = vlaneseq
    %v254 = vshrl.u32 %v253, 7
    %v255 = vsub.s32 %v230, %v254
    %v256 = vrot.slane %v189, %v255
    %v257 = vsel %vm235, %v256, %v252
    %v258 = vlaneseq
    %v259 = vshrl.u32 %v258, 7
    %v260 = vsub.s32 %v237, %v259
    %v261 = vrot.slane %v192, %v260
    %v262 = vsel %vm242, %v261, %v257
    %v263 = vlaneseq
    %v264 = vshrl.u32 %v263, 7
    %v265 = vsub.s32 %v218, %v264
    %v266 = vrot.slane %v195, %v265
    %v267 = vlaneseq
    %v268 = vshrl.u32 %v267, 7
    %v269 = vsub.s32 %v223, %v268
    %v270 = vrot.slane %v198, %v269
    %v271 = vsel %vm228, %v270, %v266
    %v272 = vlaneseq
    %v273 = vshrl.u32 %v272, 7
    %v274 = vsub.s32 %v230, %v273
    %v275 = vrot.slane %v201, %v274
    %v276 = vsel %vm235, %v275, %v271
    %v277 = vlaneseq
    %v278 = vshrl.u32 %v277, 7
    %v279 = vsub.s32 %v237, %v278
    %v280 = vrot.slane %v204, %v279
    %v281 = vsel %vm242, %v280, %v276
    %v282 = vlaneseq
    %v283 = vshrl.u32 %v282, 7
    %v284 = vsub.s32 %v218, %v283
    %v285 = vrot.slane %v207, %v284
    %v286 = vlaneseq
    %v287 = vshrl.u32 %v286, 7
    %v288 = vsub.s32 %v223, %v287
    %v289 = vrot.slane %v210, %v288
    %v290 = vsel %vm228, %v289, %v285
    %v291 = vlaneseq
    %v292 = vshrl.u32 %v291, 7
    %v293 = vsub.s32 %v230, %v292
    %v294 = vrot.slane %v213, %v293
    %v295 = vsel %vm235, %v294, %v290
    %v296 = vlaneseq
    %v297 = vshrl.u32 %v296, 7
    %v298 = vsub.s32 %v237, %v297
    %v299 = vrot.slane %v216, %v298
    %v300 = vsel %vm242, %v299, %v295
    %vm301 = vcmask 1041409
    %v302 = vsel %vm301, %v262, %v243
    %v303 = vsel %vm301, %v300, %v281
    %vm306 = vcmask 254976
    %v307 = vsel %vm306, %v302, 0.0
    %308 = vadd.xlane.f32.xlu0 %v307
    %v309 = vpop.xlane.xlu0 %308
    %v310 = vsel %vm306, %v303, 0.0
    %311 = vadd.xlane.f32.xlu0 %v310
    %v312 = vpop.xlane.xlu0 %311
    %v314 = vlaneseq
    %v315 = vshrl.u32 %v314, 7
    %v316 = vsub.s32 0, %v315
    %v317 = vrot.slane %v84, %v316
    %319 = vbcast.lane.b32.xlu0 %v317, 256
    %v320 = vpop.permute.xlu0 %319
    %v322 = vadd.f32 %v309, %v320
    %v323 = vadd.f32 %v312, %v320
    %v324 = vmax.f32 %v322, 0.0
    %v325 = vmax.f32 %v323, 0.0
    %v330 = vlaneseq
    %v331 = vshrl.u32 %v330, 7
    %v332 = vsub.s32 0, %v331
    %v333 = vrot.slane %v85, %v332
    %335 = vbcast.lane.b32.xlu0 %v333, 256
    %v336 = vpop.permute.xlu0 %335
    %v337 = vlaneseq
    %v338 = vshrl.u32 %v337, 7
    %v339 = vsub.s32 1, %v338
    %v340 = vrot.slane %v85, %v339
    %342 = vbcast.lane.b32.xlu0 %v340, 256
    %v343 = vpop.permute.xlu0 %342
    %v344 = vlaneseq
    %v345 = vshrl.u32 %v344, 7
    %v346 = vsub.s32 2, %v345
    %v347 = vrot.slane %v85, %v346
    %349 = vbcast.lane.b32.xlu0 %v347, 256
    %v350 = vpop.permute.xlu0 %349
    %v351 = vlaneseq
    %v352 = vshrl.u32 %v351, 7
    %v353 = vsub.s32 3, %v352
    %v354 = vrot.slane %v85, %v353
    %356 = vbcast.lane.b32.xlu0 %v354, 256
    %v357 = vpop.permute.xlu0 %356
    %v358 = vlaneseq
    %v359 = vshrl.u32 %v358, 7
    %v360 = vsub.s32 4, %v359
    %v361 = vrot.slane %v85, %v360
    %363 = vbcast.lane.b32.xlu0 %v361, 256
    %v364 = vpop.permute.xlu0 %363
    %v365 = vlaneseq
    %v366 = vshrl.u32 %v365, 7
    %v367 = vsub.s32 5, %v366
    %v368 = vrot.slane %v85, %v367
    %370 = vbcast.lane.b32.xlu0 %v368, 256
    %v371 = vpop.permute.xlu0 %370
    %v372 = vlaneseq
    %v373 = vshrl.u32 %v372, 7
    %v374 = vsub.s32 6, %v373
    %v375 = vrot.slane %v85, %v374
    %377 = vbcast.lane.b32.xlu0 %v375, 256
    %v378 = vpop.permute.xlu0 %377
    %v379 = vlaneseq
    %v380 = vshrl.u32 %v379, 7
    %v381 = vsub.s32 7, %v380
    %v382 = vrot.slane %v85, %v381
    %384 = vbcast.lane.b32.xlu0 %v382, 256
    %v385 = vpop.permute.xlu0 %384
    %v386 = vlaneseq
    %v387 = vshrl.u32 %v386, 7
    %v388 = vsub.s32 0, %v387
    %v389 = vrot.slane %v86, %v388
    %391 = vbcast.lane.b32.xlu0 %v389, 256
    %v392 = vpop.permute.xlu0 %391
    %v393 = vlaneseq
    %v394 = vshrl.u32 %v393, 7
    %v395 = vsub.s32 1, %v394
    %v396 = vrot.slane %v86, %v395
    %398 = vbcast.lane.b32.xlu0 %v396, 256
    %v399 = vpop.permute.xlu0 %398
    %v400 = vlaneseq
    %v401 = vshrl.u32 %v400, 7
    %v402 = vsub.s32 2, %v401
    %v403 = vrot.slane %v86, %v402
    %405 = vbcast.lane.b32.xlu0 %v403, 256
    %v406 = vpop.permute.xlu0 %405
    %v407 = vlaneseq
    %v408 = vshrl.u32 %v407, 7
    %v409 = vsub.s32 3, %v408
    %v410 = vrot.slane %v86, %v409
    %412 = vbcast.lane.b32.xlu0 %v410, 256
    %v413 = vpop.permute.xlu0 %412
    %v414 = vlaneseq
    %v415 = vshrl.u32 %v414, 7
    %v416 = vsub.s32 4, %v415
    %v417 = vrot.slane %v86, %v416
    %419 = vbcast.lane.b32.xlu0 %v417, 256
    %v420 = vpop.permute.xlu0 %419
    %v421 = vlaneseq
    %v422 = vshrl.u32 %v421, 7
    %v423 = vsub.s32 5, %v422
    %v424 = vrot.slane %v86, %v423
    %426 = vbcast.lane.b32.xlu0 %v424, 256
    %v427 = vpop.permute.xlu0 %426
    %v428 = vlaneseq
    %v429 = vshrl.u32 %v428, 7
    %v430 = vsub.s32 6, %v429
    %v431 = vrot.slane %v86, %v430
    %433 = vbcast.lane.b32.xlu0 %v431, 256
    %v434 = vpop.permute.xlu0 %433
    %v435 = vlaneseq
    %v436 = vshrl.u32 %v435, 7
    %v437 = vsub.s32 7, %v436
    %v438 = vrot.slane %v86, %v437
    %440 = vbcast.lane.b32.xlu0 %v438, 256
    %v441 = vpop.permute.xlu0 %440
    %v442 = vlaneseq
    %v443 = vshrl.u32 %v442, 7
    %v444 = vsub.s32 0, %v443
    %v445 = vrot.slane %v87, %v444
    %447 = vbcast.lane.b32.xlu0 %v445, 256
    %v448 = vpop.permute.xlu0 %447
    %v449 = vlaneseq
    %v450 = vshrl.u32 %v449, 7
    %v451 = vsub.s32 1, %v450
    %v452 = vrot.slane %v87, %v451
    %454 = vbcast.lane.b32.xlu0 %v452, 256
    %v455 = vpop.permute.xlu0 %454
    %v456 = vlaneseq
    %v457 = vshrl.u32 %v456, 7
    %v458 = vsub.s32 2, %v457
    %v459 = vrot.slane %v87, %v458
    %461 = vbcast.lane.b32.xlu0 %v459, 256
    %v462 = vpop.permute.xlu0 %461
    %v463 = vlaneseq
    %v464 = vshrl.u32 %v463, 7
    %v465 = vsub.s32 3, %v464
    %v466 = vrot.slane %v87, %v465
    %468 = vbcast.lane.b32.xlu0 %v466, 256
    %v469 = vpop.permute.xlu0 %468
    %v470 = vlaneseq
    %v471 = vshrl.u32 %v470, 7
    %v472 = vsub.s32 4, %v471
    %v473 = vrot.slane %v87, %v472
    %475 = vbcast.lane.b32.xlu0 %v473, 256
    %v476 = vpop.permute.xlu0 %475
    %v477 = vlaneseq
    %v478 = vshrl.u32 %v477, 7
    %v479 = vsub.s32 5, %v478
    %v480 = vrot.slane %v87, %v479
    %482 = vbcast.lane.b32.xlu0 %v480, 256
    %v483 = vpop.permute.xlu0 %482
    %v484 = vlaneseq
    %v485 = vshrl.u32 %v484, 7
    %v486 = vsub.s32 6, %v485
    %v487 = vrot.slane %v87, %v486
    %489 = vbcast.lane.b32.xlu0 %v487, 256
    %v490 = vpop.permute.xlu0 %489
    %v491 = vlaneseq
    %v492 = vshrl.u32 %v491, 7
    %v493 = vsub.s32 7, %v492
    %v494 = vrot.slane %v87, %v493
    %496 = vbcast.lane.b32.xlu0 %v494, 256
    %v497 = vpop.permute.xlu0 %496
    %v498 = vlaneseq
    %v499 = vshrl.u32 %v498, 7
    %v500 = vsub.s32 0, %v499
    %v501 = vrot.slane %v88, %v500
    %503 = vbcast.lane.b32.xlu0 %v501, 256
    %v504 = vpop.permute.xlu0 %503
    %v505 = vlaneseq
    %v506 = vshrl.u32 %v505, 7
    %v507 = vsub.s32 1, %v506
    %v508 = vrot.slane %v88, %v507
    %510 = vbcast.lane.b32.xlu0 %v508, 256
    %v511 = vpop.permute.xlu0 %510
    %v512 = vlaneseq
    %v513 = vshrl.u32 %v512, 7
    %v514 = vsub.s32 2, %v513
    %v515 = vrot.slane %v88, %v514
    %517 = vbcast.lane.b32.xlu0 %v515, 256
    %v518 = vpop.permute.xlu0 %517
    %v519 = vlaneseq
    %v520 = vshrl.u32 %v519, 7
    %v521 = vsub.s32 3, %v520
    %v522 = vrot.slane %v88, %v521
    %524 = vbcast.lane.b32.xlu0 %v522, 256
    %v525 = vpop.permute.xlu0 %524
    %v526 = vlaneseq
    %v527 = vshrl.u32 %v526, 7
    %v528 = vsub.s32 4, %v527
    %v529 = vrot.slane %v88, %v528
    %531 = vbcast.lane.b32.xlu0 %v529, 256
    %v532 = vpop.permute.xlu0 %531
    %v533 = vlaneseq
    %v534 = vshrl.u32 %v533, 7
    %v535 = vsub.s32 5, %v534
    %v536 = vrot.slane %v88, %v535
    %538 = vbcast.lane.b32.xlu0 %v536, 256
    %v539 = vpop.permute.xlu0 %538
    %v540 = vlaneseq
    %v541 = vshrl.u32 %v540, 7
    %v542 = vsub.s32 6, %v541
    %v543 = vrot.slane %v88, %v542
    %545 = vbcast.lane.b32.xlu0 %v543, 256
    %v546 = vpop.permute.xlu0 %545
    %v547 = vlaneseq
    %v548 = vshrl.u32 %v547, 7
    %v549 = vsub.s32 7, %v548
    %v550 = vrot.slane %v88, %v549
    %552 = vbcast.lane.b32.xlu0 %v550, 256
    %v553 = vpop.permute.xlu0 %552
    %v586 = vmul.f32 %v324, %v336
    %v587 = vmul.f32 %v324, %v343
    %v588 = vmul.f32 %v324, %v350
    %v589 = vmul.f32 %v324, %v357
    %v590 = vmul.f32 %v324, %v364
    %v591 = vmul.f32 %v324, %v371
    %v592 = vmul.f32 %v324, %v378
    %v593 = vmul.f32 %v324, %v385
    %v594 = vmul.f32 %v324, %v392
    %v595 = vmul.f32 %v324, %v399
    %v596 = vmul.f32 %v324, %v406
    %v597 = vmul.f32 %v324, %v413
    %v598 = vmul.f32 %v324, %v420
    %v599 = vmul.f32 %v324, %v427
    %v600 = vmul.f32 %v324, %v434
    %v601 = vmul.f32 %v324, %v441
    %v602 = vmul.f32 %v324, %v448
    %v603 = vmul.f32 %v324, %v455
    %v604 = vmul.f32 %v324, %v462
    %v605 = vmul.f32 %v324, %v469
    %v606 = vmul.f32 %v324, %v476
    %v607 = vmul.f32 %v324, %v483
    %v608 = vmul.f32 %v324, %v490
    %v609 = vmul.f32 %v324, %v497
    %v610 = vmul.f32 %v324, %v504
    %v611 = vmul.f32 %v324, %v511
    %v612 = vmul.f32 %v324, %v518
    %v613 = vmul.f32 %v324, %v525
    %v614 = vmul.f32 %v324, %v532
    %v615 = vmul.f32 %v324, %v539
    %v616 = vmul.f32 %v324, %v546
    %v617 = vmul.f32 %v324, %v553
    %v618 = vmul.f32 %v325, %v336
    %v619 = vmul.f32 %v325, %v343
    %v620 = vmul.f32 %v325, %v350
    %v621 = vmul.f32 %v325, %v357
    %v622 = vmul.f32 %v325, %v364
    %v623 = vmul.f32 %v325, %v371
    %v624 = vmul.f32 %v325, %v378
    %v625 = vmul.f32 %v325, %v385
    %v626 = vmul.f32 %v325, %v392
    %v627 = vmul.f32 %v325, %v399
    %v628 = vmul.f32 %v325, %v406
    %v629 = vmul.f32 %v325, %v413
    %v630 = vmul.f32 %v325, %v420
    %v631 = vmul.f32 %v325, %v427
    %v632 = vmul.f32 %v325, %v434
    %v633 = vmul.f32 %v325, %v441
    %v634 = vmul.f32 %v325, %v448
    %v635 = vmul.f32 %v325, %v455
    %v636 = vmul.f32 %v325, %v462
    %v637 = vmul.f32 %v325, %v469
    %v638 = vmul.f32 %v325, %v476
    %v639 = vmul.f32 %v325, %v483
    %v640 = vmul.f32 %v325, %v490
    %v641 = vmul.f32 %v325, %v497
    %v642 = vmul.f32 %v325, %v504
    %v643 = vmul.f32 %v325, %v511
    %v644 = vmul.f32 %v325, %v518
    %v645 = vmul.f32 %v325, %v525
    %v646 = vmul.f32 %v325, %v532
    %v647 = vmul.f32 %v325, %v539
    %v648 = vmul.f32 %v325, %v546
    %v649 = vmul.f32 %v325, %v553
    %714 = vset.pattern.permute.xlu0 0
    %715 = vperm.xlu0 %714, %v586
    %v716 = vpop.permute.xlu0 %715
    %717 = vset.pattern.permute.xlu0 0
    %718 = vperm.xlu0 %717, %v587
    %v719 = vpop.permute.xlu0 %718
    %720 = vset.pattern.permute.xlu0 0
    %721 = vperm.xlu0 %720, %v588
    %v722 = vpop.permute.xlu0 %721
    %723 = vset.pattern.permute.xlu0 0
    %724 = vperm.xlu0 %723, %v589
    %v725 = vpop.permute.xlu0 %724
    %726 = vset.pattern.permute.xlu0 0
    %727 = vperm.xlu0 %726, %v590
    %v728 = vpop.permute.xlu0 %727
    %729 = vset.pattern.permute.xlu0 0
    %730 = vperm.xlu0 %729, %v591
    %v731 = vpop.permute.xlu0 %730
    %732 = vset.pattern.permute.xlu0 0
    %733 = vperm.xlu0 %732, %v592
    %v734 = vpop.permute.xlu0 %733
    %735 = vset.pattern.permute.xlu0 0
    %736 = vperm.xlu0 %735, %v593
    %v737 = vpop.permute.xlu0 %736
    %738 = vset.pattern.permute.xlu0 0
    %739 = vperm.xlu0 %738, %v594
    %v740 = vpop.permute.xlu0 %739
    %741 = vset.pattern.permute.xlu0 0
    %742 = vperm.xlu0 %741, %v595
    %v743 = vpop.permute.xlu0 %742
    %744 = vset.pattern.permute.xlu0 0
    %745 = vperm.xlu0 %744, %v596
    %v746 = vpop.permute.xlu0 %745
    %747 = vset.pattern.permute.xlu0 0
    %748 = vperm.xlu0 %747, %v597
    %v749 = vpop.permute.xlu0 %748
    %750 = vset.pattern.permute.xlu0 0
    %751 = vperm.xlu0 %750, %v598
    %v752 = vpop.permute.xlu0 %751
    %753 = vset.pattern.permute.xlu0 0
    %754 = vperm.xlu0 %753, %v599
    %v755 = vpop.permute.xlu0 %754
    %756 = vset.pattern.permute.xlu0 0
    %757 = vperm.xlu0 %756, %v600
    %v758 = vpop.permute.xlu0 %757
    %759 = vset.pattern.permute.xlu0 0
    %760 = vperm.xlu0 %759, %v601
    %v761 = vpop.permute.xlu0 %760
    %762 = vset.pattern.permute.xlu0 0
    %763 = vperm.xlu0 %762, %v602
    %v764 = vpop.permute.xlu0 %763
    %765 = vset.pattern.permute.xlu0 0
    %766 = vperm.xlu0 %765, %v603
    %v767 = vpop.permute.xlu0 %766
    %768 = vset.pattern.permute.xlu0 0
    %769 = vperm.xlu0 %768, %v604
    %v770 = vpop.permute.xlu0 %769
    %771 = vset.pattern.permute.xlu0 0
    %772 = vperm.xlu0 %771, %v605
    %v773 = vpop.permute.xlu0 %772
    %774 = vset.pattern.permute.xlu0 0
    %775 = vperm.xlu0 %774, %v606
    %v776 = vpop.permute.xlu0 %775
    %777 = vset.pattern.permute.xlu0 0
    %778 = vperm.xlu0 %777, %v607
    %v779 = vpop.permute.xlu0 %778
    %780 = vset.pattern.permute.xlu0 0
    %781 = vperm.xlu0 %780, %v608
    %v782 = vpop.permute.xlu0 %781
    %783 = vset.pattern.permute.xlu0 0
    %784 = vperm.xlu0 %783, %v609
    %v785 = vpop.permute.xlu0 %784
    %786 = vset.pattern.permute.xlu0 0
    %787 = vperm.xlu0 %786, %v610
    %v788 = vpop.permute.xlu0 %787
    %789 = vset.pattern.permute.xlu0 0
    %790 = vperm.xlu0 %789, %v611
    %v791 = vpop.permute.xlu0 %790
    %792 = vset.pattern.permute.xlu0 0
    %793 = vperm.xlu0 %792, %v612
    %v794 = vpop.permute.xlu0 %793
    %795 = vset.pattern.permute.xlu0 0
    %796 = vperm.xlu0 %795, %v613
    %v797 = vpop.permute.xlu0 %796
    %798 = vset.pattern.permute.xlu0 0
    %799 = vperm.xlu0 %798, %v614
    %v800 = vpop.permute.xlu0 %799
    %801 = vset.pattern.permute.xlu0 0
    %802 = vperm.xlu0 %801, %v615
    %v803 = vpop.permute.xlu0 %802
    %804 = vset.pattern.permute.xlu0 0
    %805 = vperm.xlu0 %804, %v616
    %v806 = vpop.permute.xlu0 %805
    %807 = vset.pattern.permute.xlu0 0
    %808 = vperm.xlu0 %807, %v617
    %v809 = vpop.permute.xlu0 %808
    %810 = vset.pattern.permute.xlu0 0
    %811 = vperm.xlu0 %810, %v618
    %v812 = vpop.permute.xlu0 %811
    %813 = vset.pattern.permute.xlu0 0
    %814 = vperm.xlu0 %813, %v619
    %v815 = vpop.permute.xlu0 %814
    %816 = vset.pattern.permute.xlu0 0
    %817 = vperm.xlu0 %816, %v620
    %v818 = vpop.permute.xlu0 %817
    %819 = vset.pattern.permute.xlu0 0
    %820 = vperm.xlu0 %819, %v621
    %v821 = vpop.permute.xlu0 %820
    %822 = vset.pattern.permute.xlu0 0
    %823 = vperm.xlu0 %822, %v622
    %v824 = vpop.permute.xlu0 %823
    %825 = vset.pattern.permute.xlu0 0
    %826 = vperm.xlu0 %825, %v623
    %v827 = vpop.permute.xlu0 %826
    %828 = vset.pattern.permute.xlu0 0
    %829 = vperm.xlu0 %828, %v624
    %v830 = vpop.permute.xlu0 %829
    %831 = vset.pattern.permute.xlu0 0
    %832 = vperm.xlu0 %831, %v625
    %v833 = vpop.permute.xlu0 %832
    %834 = vset.pattern.permute.xlu0 0
    %835 = vperm.xlu0 %834, %v626
    %v836 = vpop.permute.xlu0 %835
    %837 = vset.pattern.permute.xlu0 0
    %838 = vperm.xlu0 %837, %v627
    %v839 = vpop.permute.xlu0 %838
    %840 = vset.pattern.permute.xlu0 0
    %841 = vperm.xlu0 %840, %v628
    %v842 = vpop.permute.xlu0 %841
    %843 = vset.pattern.permute.xlu0 0
    %844 = vperm.xlu0 %843, %v629
    %v845 = vpop.permute.xlu0 %844
    %846 = vset.pattern.permute.xlu0 0
    %847 = vperm.xlu0 %846, %v630
    %v848 = vpop.permute.xlu0 %847
    %849 = vset.pattern.permute.xlu0 0
    %850 = vperm.xlu0 %849, %v631
    %v851 = vpop.permute.xlu0 %850
    %852 = vset.pattern.permute.xlu0 0
    %853 = vperm.xlu0 %852, %v632
    %v854 = vpop.permute.xlu0 %853
    %855 = vset.pattern.permute.xlu0 0
    %856 = vperm.xlu0 %855, %v633
    %v857 = vpop.permute.xlu0 %856
    %858 = vset.pattern.permute.xlu0 0
    %859 = vperm.xlu0 %858, %v634
    %v860 = vpop.permute.xlu0 %859
    %861 = vset.pattern.permute.xlu0 0
    %862 = vperm.xlu0 %861, %v635
    %v863 = vpop.permute.xlu0 %862
    %864 = vset.pattern.permute.xlu0 0
    %865 = vperm.xlu0 %864, %v636
    %v866 = vpop.permute.xlu0 %865
    %867 = vset.pattern.permute.xlu0 0
    %868 = vperm.xlu0 %867, %v637
    %v869 = vpop.permute.xlu0 %868
    %870 = vset.pattern.permute.xlu0 0
    %871 = vperm.xlu0 %870, %v638
    %v872 = vpop.permute.xlu0 %871
    %873 = vset.pattern.permute.xlu0 0
    %874 = vperm.xlu0 %873, %v639
    %v875 = vpop.permute.xlu0 %874
    %876 = vset.pattern.permute.xlu0 0
    %877 = vperm.xlu0 %876, %v640
    %v878 = vpop.permute.xlu0 %877
    %879 = vset.pattern.permute.xlu0 0
    %880 = vperm.xlu0 %879, %v641
    %v881 = vpop.permute.xlu0 %880
    %882 = vset.pattern.permute.xlu0 0
    %883 = vperm.xlu0 %882, %v642
    %v884 = vpop.permute.xlu0 %883
    %885 = vset.pattern.permute.xlu0 0
    %886 = vperm.xlu0 %885, %v643
    %v887 = vpop.permute.xlu0 %886
    %888 = vset.pattern.permute.xlu0 0
    %889 = vperm.xlu0 %888, %v644
    %v890 = vpop.permute.xlu0 %889
    %891 = vset.pattern.permute.xlu0 0
    %892 = vperm.xlu0 %891, %v645
    %v893 = vpop.permute.xlu0 %892
    %894 = vset.pattern.permute.xlu0 0
    %895 = vperm.xlu0 %894, %v646
    %v896 = vpop.permute.xlu0 %895
    %897 = vset.pattern.permute.xlu0 0
    %898 = vperm.xlu0 %897, %v647
    %v899 = vpop.permute.xlu0 %898
    %900 = vset.pattern.permute.xlu0 0
    %901 = vperm.xlu0 %900, %v648
    %v902 = vpop.permute.xlu0 %901
    %903 = vset.pattern.permute.xlu0 0
    %904 = vperm.xlu0 %903, %v649
    %v905 = vpop.permute.xlu0 %904
    %v906 = vlaneseq
    %v907 = vshrl.u32 %v906, 7
    %v908 = vsub.s32 %v218, %v907
    %v909 = vrot.slane %v716, %v908
    %v910 = vlaneseq
    %v911 = vshrl.u32 %v910, 7
    %v912 = vsub.s32 %v218, %v911
    %v913 = vrot.slane %v719, %v912
    %v914 = vlaneseq
    %v915 = vshrl.u32 %v914, 7
    %v916 = vsub.s32 %v218, %v915
    %v917 = vrot.slane %v722, %v916
    %v918 = vlaneseq
    %v919 = vshrl.u32 %v918, 7
    %v920 = vsub.s32 %v218, %v919
    %v921 = vrot.slane %v725, %v920
    %v922 = vlaneseq
    %v923 = vshrl.u32 %v922, 7
    %v924 = vsub.s32 %v218, %v923
    %v925 = vrot.slane %v728, %v924
    %v926 = vlaneseq
    %v927 = vshrl.u32 %v926, 7
    %v928 = vsub.s32 %v218, %v927
    %v929 = vrot.slane %v731, %v928
    %v930 = vlaneseq
    %v931 = vshrl.u32 %v930, 7
    %v932 = vsub.s32 %v218, %v931
    %v933 = vrot.slane %v734, %v932
    %v934 = vlaneseq
    %v935 = vshrl.u32 %v934, 7
    %v936 = vsub.s32 %v218, %v935
    %v937 = vrot.slane %v737, %v936
    %v938 = vlaneseq
    %v939 = vshrl.u32 %v938, 7
    %v940 = vsub.s32 %v218, %v939
    %v941 = vrot.slane %v740, %v940
    %v942 = vlaneseq
    %v943 = vshrl.u32 %v942, 7
    %v944 = vsub.s32 %v218, %v943
    %v945 = vrot.slane %v743, %v944
    %v946 = vlaneseq
    %v947 = vshrl.u32 %v946, 7
    %v948 = vsub.s32 %v218, %v947
    %v949 = vrot.slane %v746, %v948
    %v950 = vlaneseq
    %v951 = vshrl.u32 %v950, 7
    %v952 = vsub.s32 %v218, %v951
    %v953 = vrot.slane %v749, %v952
    %v954 = vlaneseq
    %v955 = vshrl.u32 %v954, 7
    %v956 = vsub.s32 %v218, %v955
    %v957 = vrot.slane %v752, %v956
    %v958 = vlaneseq
    %v959 = vshrl.u32 %v958, 7
    %v960 = vsub.s32 %v218, %v959
    %v961 = vrot.slane %v755, %v960
    %v962 = vlaneseq
    %v963 = vshrl.u32 %v962, 7
    %v964 = vsub.s32 %v218, %v963
    %v965 = vrot.slane %v758, %v964
    %v966 = vlaneseq
    %v967 = vshrl.u32 %v966, 7
    %v968 = vsub.s32 %v218, %v967
    %v969 = vrot.slane %v761, %v968
    %v970 = vlaneseq
    %v971 = vshrl.u32 %v970, 7
    %v972 = vsub.s32 %v218, %v971
    %v973 = vrot.slane %v764, %v972
    %v974 = vlaneseq
    %v975 = vshrl.u32 %v974, 7
    %v976 = vsub.s32 %v218, %v975
    %v977 = vrot.slane %v767, %v976
    %v978 = vlaneseq
    %v979 = vshrl.u32 %v978, 7
    %v980 = vsub.s32 %v218, %v979
    %v981 = vrot.slane %v770, %v980
    %v982 = vlaneseq
    %v983 = vshrl.u32 %v982, 7
    %v984 = vsub.s32 %v218, %v983
    %v985 = vrot.slane %v773, %v984
    %v986 = vlaneseq
    %v987 = vshrl.u32 %v986, 7
    %v988 = vsub.s32 %v218, %v987
    %v989 = vrot.slane %v776, %v988
    %v990 = vlaneseq
    %v991 = vshrl.u32 %v990, 7
    %v992 = vsub.s32 %v218, %v991
    %v993 = vrot.slane %v779, %v992
    %v994 = vlaneseq
    %v995 = vshrl.u32 %v994, 7
    %v996 = vsub.s32 %v218, %v995
    %v997 = vrot.slane %v782, %v996
    %v998 = vlaneseq
    %v999 = vshrl.u32 %v998, 7
    %v1000 = vsub.s32 %v218, %v999
    %v1001 = vrot.slane %v785, %v1000
    %v1002 = vlaneseq
    %v1003 = vshrl.u32 %v1002, 7
    %v1004 = vsub.s32 %v218, %v1003
    %v1005 = vrot.slane %v788, %v1004
    %v1006 = vlaneseq
    %v1007 = vshrl.u32 %v1006, 7
    %v1008 = vsub.s32 %v218, %v1007
    %v1009 = vrot.slane %v791, %v1008
    %v1010 = vlaneseq
    %v1011 = vshrl.u32 %v1010, 7
    %v1012 = vsub.s32 %v218, %v1011
    %v1013 = vrot.slane %v794, %v1012
    %v1014 = vlaneseq
    %v1015 = vshrl.u32 %v1014, 7
    %v1016 = vsub.s32 %v218, %v1015
    %v1017 = vrot.slane %v797, %v1016
    %v1018 = vlaneseq
    %v1019 = vshrl.u32 %v1018, 7
    %v1020 = vsub.s32 %v218, %v1019
    %v1021 = vrot.slane %v800, %v1020
    %v1022 = vlaneseq
    %v1023 = vshrl.u32 %v1022, 7
    %v1024 = vsub.s32 %v218, %v1023
    %v1025 = vrot.slane %v803, %v1024
    %v1026 = vlaneseq
    %v1027 = vshrl.u32 %v1026, 7
    %v1028 = vsub.s32 %v218, %v1027
    %v1029 = vrot.slane %v806, %v1028
    %v1030 = vlaneseq
    %v1031 = vshrl.u32 %v1030, 7
    %v1032 = vsub.s32 %v218, %v1031
    %v1033 = vrot.slane %v809, %v1032
    %v1034 = vlaneseq
    %v1035 = vshrl.u32 %v1034, 7
    %v1036 = vsub.s32 %v218, %v1035
    %v1037 = vrot.slane %v812, %v1036
    %v1038 = vlaneseq
    %v1039 = vshrl.u32 %v1038, 7
    %v1040 = vsub.s32 %v218, %v1039
    %v1041 = vrot.slane %v815, %v1040
    %v1042 = vlaneseq
    %v1043 = vshrl.u32 %v1042, 7
    %v1044 = vsub.s32 %v218, %v1043
    %v1045 = vrot.slane %v818, %v1044
    %v1046 = vlaneseq
    %v1047 = vshrl.u32 %v1046, 7
    %v1048 = vsub.s32 %v218, %v1047
    %v1049 = vrot.slane %v821, %v1048
    %v1050 = vlaneseq
    %v1051 = vshrl.u32 %v1050, 7
    %v1052 = vsub.s32 %v218, %v1051
    %v1053 = vrot.slane %v824, %v1052
    %v1054 = vlaneseq
    %v1055 = vshrl.u32 %v1054, 7
    %v1056 = vsub.s32 %v218, %v1055
    %v1057 = vrot.slane %v827, %v1056
    %v1058 = vlaneseq
    %v1059 = vshrl.u32 %v1058, 7
    %v1060 = vsub.s32 %v218, %v1059
    %v1061 = vrot.slane %v830, %v1060
    %v1062 = vlaneseq
    %v1063 = vshrl.u32 %v1062, 7
    %v1064 = vsub.s32 %v218, %v1063
    %v1065 = vrot.slane %v833, %v1064
    %v1066 = vlaneseq
    %v1067 = vshrl.u32 %v1066, 7
    %v1068 = vsub.s32 %v218, %v1067
    %v1069 = vrot.slane %v836, %v1068
    %v1070 = vlaneseq
    %v1071 = vshrl.u32 %v1070, 7
    %v1072 = vsub.s32 %v218, %v1071
    %v1073 = vrot.slane %v839, %v1072
    %v1074 = vlaneseq
    %v1075 = vshrl.u32 %v1074, 7
    %v1076 = vsub.s32 %v218, %v1075
    %v1077 = vrot.slane %v842, %v1076
    %v1078 = vlaneseq
    %v1079 = vshrl.u32 %v1078, 7
    %v1080 = vsub.s32 %v218, %v1079
    %v1081 = vrot.slane %v845, %v1080
    %v1082 = vlaneseq
    %v1083 = vshrl.u32 %v1082, 7
    %v1084 = vsub.s32 %v218, %v1083
    %v1085 = vrot.slane %v848, %v1084
    %v1086 = vlaneseq
    %v1087 = vshrl.u32 %v1086, 7
    %v1088 = vsub.s32 %v218, %v1087
    %v1089 = vrot.slane %v851, %v1088
    %v1090 = vlaneseq
    %v1091 = vshrl.u32 %v1090, 7
    %v1092 = vsub.s32 %v218, %v1091
    %v1093 = vrot.slane %v854, %v1092
    %v1094 = vlaneseq
    %v1095 = vshrl.u32 %v1094, 7
    %v1096 = vsub.s32 %v218, %v1095
    %v1097 = vrot.slane %v857, %v1096
    %v1098 = vlaneseq
    %v1099 = vshrl.u32 %v1098, 7
    %v1100 = vsub.s32 %v218, %v1099
    %v1101 = vrot.slane %v860, %v1100
    %v1102 = vlaneseq
    %v1103 = vshrl.u32 %v1102, 7
    %v1104 = vsub.s32 %v218, %v1103
    %v1105 = vrot.slane %v863, %v1104
    %v1106 = vlaneseq
    %v1107 = vshrl.u32 %v1106, 7
    %v1108 = vsub.s32 %v218, %v1107
    %v1109 = vrot.slane %v866, %v1108
    %v1110 = vlaneseq
    %v1111 = vshrl.u32 %v1110, 7
    %v1112 = vsub.s32 %v218, %v1111
    %v1113 = vrot.slane %v869, %v1112
    %v1114 = vlaneseq
    %v1115 = vshrl.u32 %v1114, 7
    %v1116 = vsub.s32 %v218, %v1115
    %v1117 = vrot.slane %v872, %v1116
    %v1118 = vlaneseq
    %v1119 = vshrl.u32 %v1118, 7
    %v1120 = vsub.s32 %v218, %v1119
    %v1121 = vrot.slane %v875, %v1120
    %v1122 = vlaneseq
    %v1123 = vshrl.u32 %v1122, 7
    %v1124 = vsub.s32 %v218, %v1123
    %v1125 = vrot.slane %v878, %v1124
    %v1126 = vlaneseq
    %v1127 = vshrl.u32 %v1126, 7
    %v1128 = vsub.s32 %v218, %v1127
    %v1129 = vrot.slane %v881, %v1128
    %v1130 = vlaneseq
    %v1131 = vshrl.u32 %v1130, 7
    %v1132 = vsub.s32 %v218, %v1131
    %v1133 = vrot.slane %v884, %v1132
    %v1134 = vlaneseq
    %v1135 = vshrl.u32 %v1134, 7
    %v1136 = vsub.s32 %v218, %v1135
    %v1137 = vrot.slane %v887, %v1136
    %v1138 = vlaneseq
    %v1139 = vshrl.u32 %v1138, 7
    %v1140 = vsub.s32 %v218, %v1139
    %v1141 = vrot.slane %v890, %v1140
    %v1142 = vlaneseq
    %v1143 = vshrl.u32 %v1142, 7
    %v1144 = vsub.s32 %v218, %v1143
    %v1145 = vrot.slane %v893, %v1144
    %v1146 = vlaneseq
    %v1147 = vshrl.u32 %v1146, 7
    %v1148 = vsub.s32 %v218, %v1147
    %v1149 = vrot.slane %v896, %v1148
    %v1150 = vlaneseq
    %v1151 = vshrl.u32 %v1150, 7
    %v1152 = vsub.s32 %v218, %v1151
    %v1153 = vrot.slane %v899, %v1152
    %v1154 = vlaneseq
    %v1155 = vshrl.u32 %v1154, 7
    %v1156 = vsub.s32 %v218, %v1155
    %v1157 = vrot.slane %v902, %v1156
    %v1158 = vlaneseq
    %v1159 = vshrl.u32 %v1158, 7
    %v1160 = vsub.s32 %v218, %v1159
    %v1161 = vrot.slane %v905, %v1160
    %v1162 = vsel %vm301, %v913, %v909
    %vm1163 = vcmask 1042434
    %v1164 = vsel %vm1163, %v917, %v1162
    %vm1165 = vcmask 1043459
    %v1166 = vsel %vm1165, %v921, %v1164
    %vm1167 = vcmask 1044484
    %v1168 = vsel %vm1167, %v925, %v1166
    %vm1169 = vcmask 1045509
    %v1170 = vsel %vm1169, %v929, %v1168
    %vm1171 = vcmask 1046534
    %v1172 = vsel %vm1171, %v933, %v1170
    %vm1173 = vcmask 1047559
    %v1174 = vsel %vm1173, %v937, %v1172
    %v1175 = vsel %vm301, %v945, %v941
    %v1176 = vsel %vm1163, %v949, %v1175
    %v1177 = vsel %vm1165, %v953, %v1176
    %v1178 = vsel %vm1167, %v957, %v1177
    %v1179 = vsel %vm1169, %v961, %v1178
    %v1180 = vsel %vm1171, %v965, %v1179
    %v1181 = vsel %vm1173, %v969, %v1180
    %v1182 = vsel %vm301, %v977, %v973
    %v1183 = vsel %vm1163, %v981, %v1182
    %v1184 = vsel %vm1165, %v985, %v1183
    %v1185 = vsel %vm1167, %v989, %v1184
    %v1186 = vsel %vm1169, %v993, %v1185
    %v1187 = vsel %vm1171, %v997, %v1186
    %v1188 = vsel %vm1173, %v1001, %v1187
    %v1189 = vsel %vm301, %v1009, %v1005
    %v1190 = vsel %vm1163, %v1013, %v1189
    %v1191 = vsel %vm1165, %v1017, %v1190
    %v1192 = vsel %vm1167, %v1021, %v1191
    %v1193 = vsel %vm1169, %v1025, %v1192
    %v1194 = vsel %vm1171, %v1029, %v1193
    %v1195 = vsel %vm1173, %v1033, %v1194
    %v1196 = vsel %vm301, %v1041, %v1037
    %v1197 = vsel %vm1163, %v1045, %v1196
    %v1198 = vsel %vm1165, %v1049, %v1197
    %v1199 = vsel %vm1167, %v1053, %v1198
    %v1200 = vsel %vm1169, %v1057, %v1199
    %v1201 = vsel %vm1171, %v1061, %v1200
    %v1202 = vsel %vm1173, %v1065, %v1201
    %v1203 = vsel %vm301, %v1073, %v1069
    %v1204 = vsel %vm1163, %v1077, %v1203
    %v1205 = vsel %vm1165, %v1081, %v1204
    %v1206 = vsel %vm1167, %v1085, %v1205
    %v1207 = vsel %vm1169, %v1089, %v1206
    %v1208 = vsel %vm1171, %v1093, %v1207
    %v1209 = vsel %vm1173, %v1097, %v1208
    %v1210 = vsel %vm301, %v1105, %v1101
    %v1211 = vsel %vm1163, %v1109, %v1210
    %v1212 = vsel %vm1165, %v1113, %v1211
    %v1213 = vsel %vm1167, %v1117, %v1212
    %v1214 = vsel %vm1169, %v1121, %v1213
    %v1215 = vsel %vm1171, %v1125, %v1214
    %v1216 = vsel %vm1173, %v1129, %v1215
    %v1217 = vsel %vm301, %v1137, %v1133
    %v1218 = vsel %vm1163, %v1141, %v1217
    %v1219 = vsel %vm1165, %v1145, %v1218
    %v1220 = vsel %vm1167, %v1149, %v1219
    %v1221 = vsel %vm1169, %v1153, %v1220
    %v1222 = vsel %vm1171, %v1157, %v1221
    %v1223 = vsel %vm1173, %v1161, %v1222
    %vm1232 = vcmask 15360
    %v1233 = vsel %vm1232, %v1174, 0.0
    %1234 = vadd.xlane.f32.xlu0 %v1233
    %v1235 = vpop.xlane.xlu0 %1234
    %v1236 = vsel %vm1232, %v1181, 0.0
    %1237 = vadd.xlane.f32.xlu0 %v1236
    %v1238 = vpop.xlane.xlu0 %1237
    %v1239 = vsel %vm1232, %v1188, 0.0
    %1240 = vadd.xlane.f32.xlu0 %v1239
    %v1241 = vpop.xlane.xlu0 %1240
    %v1242 = vsel %vm1232, %v1195, 0.0
    %1243 = vadd.xlane.f32.xlu0 %v1242
    %v1244 = vpop.xlane.xlu0 %1243
    %v1245 = vsel %vm1232, %v1202, 0.0
    %1246 = vadd.xlane.f32.xlu0 %v1245
    %v1247 = vpop.xlane.xlu0 %1246
    %v1248 = vsel %vm1232, %v1209, 0.0
    %1249 = vadd.xlane.f32.xlu0 %v1248
    %v1250 = vpop.xlane.xlu0 %1249
    %v1251 = vsel %vm1232, %v1216, 0.0
    %1252 = vadd.xlane.f32.xlu0 %v1251
    %v1253 = vpop.xlane.xlu0 %1252
    %v1254 = vsel %vm1232, %v1223, 0.0
    %1255 = vadd.xlane.f32.xlu0 %v1254
    %v1256 = vpop.xlane.xlu0 %1255
    %v1258 = vlaneseq
    %v1259 = vshrl.u32 %v1258, 7
    %v1260 = vsub.s32 0, %v1259
    %v1261 = vrot.slane %v89, %v1260
    %1263 = vbcast.lane.b32.xlu0 %v1261, 256
    %v1264 = vpop.permute.xlu0 %1263
    %s1266 = sor.u32 256, 8
    %1267 = vbcast.lane.b32.xlu0 %v1261, %s1266
    %v1268 = vpop.permute.xlu0 %1267
    %s1270 = sor.u32 256, 16
    %1271 = vbcast.lane.b32.xlu0 %v1261, %s1270
    %v1272 = vpop.permute.xlu0 %1271
    %s1274 = sor.u32 256, 24
    %1275 = vbcast.lane.b32.xlu0 %v1261, %s1274
    %v1276 = vpop.permute.xlu0 %1275
    %v1281 = vadd.f32 %v1235, %v1264
    %v1282 = vadd.f32 %v1238, %v1268
    %v1283 = vadd.f32 %v1241, %v1272
    %v1284 = vadd.f32 %v1244, %v1276
    %v1285 = vadd.f32 %v1247, %v1264
    %v1286 = vadd.f32 %v1250, %v1268
    %v1287 = vadd.f32 %v1253, %v1272
    %v1288 = vadd.f32 %v1256, %v1276
    %v1289 = vsub.f32 0.0, %v1281
    %v1290 = vsub.f32 0.0, %v1282
    %v1291 = vsub.f32 0.0, %v1283
    %v1292 = vsub.f32 0.0, %v1284
    %v1293 = vsub.f32 0.0, %v1285
    %v1294 = vsub.f32 0.0, %v1286
    %v1295 = vsub.f32 0.0, %v1287
    %v1296 = vsub.f32 0.0, %v1288
    %v1297 = vmul.f32 %v1289, 1.442695
    %v1298 = vpow.pop %v1297
    %v1299 = vmul.f32 %v1290, 1.442695
    %v1300 = vpow.pop %v1299
    %v1301 = vmul.f32 %v1291, 1.442695
    %v1302 = vpow.pop %v1301
    %v1303 = vmul.f32 %v1292, 1.442695
    %v1304 = vpow.pop %v1303
    %v1305 = vmul.f32 %v1293, 1.442695
    %v1306 = vpow.pop %v1305
    %v1307 = vmul.f32 %v1294, 1.442695
    %v1308 = vpow.pop %v1307
    %v1309 = vmul.f32 %v1295, 1.442695
    %v1310 = vpow.pop %v1309
    %v1311 = vmul.f32 %v1296, 1.442695
    %v1312 = vpow.pop %v1311
    %v1313 = vadd.f32 %v1298, 1.0
    %v1314 = vadd.f32 %v1300, 1.0
    %v1315 = vadd.f32 %v1302, 1.0
    %v1316 = vadd.f32 %v1304, 1.0
    %v1317 = vadd.f32 %v1306, 1.0
    %v1318 = vadd.f32 %v1308, 1.0
    %v1319 = vadd.f32 %v1310, 1.0
    %v1320 = vadd.f32 %v1312, 1.0
    %v1321 = vrcp.pop %v1313
    %v1322 = vmul.f32 1.0, %v1321
    %v1323 = vrcp.pop %v1314
    %v1324 = vmul.f32 1.0, %v1323
    %v1325 = vrcp.pop %v1315
    %v1326 = vmul.f32 1.0, %v1325
    %v1327 = vrcp.pop %v1316
    %v1328 = vmul.f32 1.0, %v1327
    %v1329 = vrcp.pop %v1317
    %v1330 = vmul.f32 1.0, %v1329
    %v1331 = vrcp.pop %v1318
    %v1332 = vmul.f32 1.0, %v1331
    %v1333 = vrcp.pop %v1319
    %v1334 = vmul.f32 1.0, %v1333
    %v1335 = vrcp.pop %v1320
    %v1336 = vmul.f32 1.0, %v1335
    %1338 = vset.pattern.permute.xlu0 0
    %1339 = vperm.xlu0 %1338, %v1322
    %v1340 = vpop.permute.xlu0 %1339
    %1343 = vset.pattern.permute.xlu0 0
    %1344 = vperm.xlu0 %1343, %v1324
    %v1345 = vpop.permute.xlu0 %1344
    %1348 = vset.pattern.permute.xlu0 0
    %1349 = vperm.xlu0 %1348, %v1326
    %v1350 = vpop.permute.xlu0 %1349
    %1353 = vset.pattern.permute.xlu0 0
    %1354 = vperm.xlu0 %1353, %v1328
    %v1355 = vpop.permute.xlu0 %1354
    %1358 = vset.pattern.permute.xlu0 0
    %1359 = vperm.xlu0 %1358, %v1330
    %v1360 = vpop.permute.xlu0 %1359
    %1363 = vset.pattern.permute.xlu0 0
    %1364 = vperm.xlu0 %1363, %v1332
    %v1365 = vpop.permute.xlu0 %1364
    %1368 = vset.pattern.permute.xlu0 0
    %1369 = vperm.xlu0 %1368, %v1334
    %v1370 = vpop.permute.xlu0 %1369
    %1373 = vset.pattern.permute.xlu0 0
    %1374 = vperm.xlu0 %1373, %v1336
    %v1375 = vpop.permute.xlu0 %1374
    %v1377 = vmul.f32 %v35, %v1340
    %v1378 = vmul.f32 %v36, %v1340
    %v1379 = vmul.f32 %v37, %v1345
    %v1380 = vmul.f32 %v38, %v1345
    %v1381 = vmul.f32 %v39, %v1350
    %v1382 = vmul.f32 %v40, %v1350
    %v1383 = vmul.f32 %v41, %v1355
    %v1384 = vmul.f32 %v42, %v1355
    %v1385 = vmul.f32 %v43, %v1360
    %v1386 = vmul.f32 %v44, %v1360
    %v1387 = vmul.f32 %v45, %v1365
    %v1388 = vmul.f32 %v46, %v1365
    %v1389 = vmul.f32 %v47, %v1370
    %v1390 = vmul.f32 %v48, %v1370
    %v1391 = vmul.f32 %v49, %v1375
    %v1392 = vmul.f32 %v50, %v1375
    %1393 = vst [vmem:[#allocation5] sm:$0xff] %v1377
    %1394 = vst [vmem:[#allocation5 + $0x8] sm:$0xff] %v1378
    %1395 = vst [vmem:[#allocation5 + $0x10] sm:$0xff] %v1379
    %1396 = vst [vmem:[#allocation5 + $0x18] sm:$0xff] %v1380
    %1397 = vst [vmem:[#allocation5 + $0x20] sm:$0xff] %v1381
    %1398 = vst [vmem:[#allocation5 + $0x28] sm:$0xff] %v1382
    %1399 = vst [vmem:[#allocation5 + $0x30] sm:$0xff] %v1383
    %1400 = vst [vmem:[#allocation5 + $0x38] sm:$0xff] %v1384
    %1401 = vst [vmem:[#allocation5 + $0x40] sm:$0xff] %v1385
    %1402 = vst [vmem:[#allocation5 + $0x48] sm:$0xff] %v1386
    %1403 = vst [vmem:[#allocation5 + $0x50] sm:$0xff] %v1387
    %1404 = vst [vmem:[#allocation5 + $0x58] sm:$0xff] %v1388
    %1405 = vst [vmem:[#allocation5 + $0x60] sm:$0xff] %v1389
    %1406 = vst [vmem:[#allocation5 + $0x68] sm:$0xff] %v1390
    %1407 = vst [vmem:[#allocation5 + $0x70] sm:$0xff] %v1391
    %1408 = vst [vmem:[#allocation5 + $0x78] sm:$0xff] %v1392
    // Predicated region
    $region26: #{tpu_custom_call.1} parent=1 // pred_check
      _
    $region27: #{tpu_custom_call.1} parent=1 // pred_check_branch
      %1410 = sbr.rel (0) target = $region29
    $region28: #{tpu_custom_call.1} parent=1 // pred_region
      %s1412 = ssub.s32 2048, 2048
      %1413 = vsyncadd [#allocation4], %s1412
      %s1414 = sshll.u32 [#allocation5], 4
      %s1415 = int_to_ptr.vmem [resolvable:$true] %s1414
      %1420 = dma.vmem_to_hbm [thread:$0]  %s1415, 2048, %s5, [#allocation4], 256, 256, 16
    $region29: #{tpu_custom_call.1} parent=1 // pred_fallthru
      _
    // Predicated region
    $region30: #{tpu_custom_call.1} parent=1 // pred_check
      _
    $region31: #{tpu_custom_call.1} parent=1 // pred_check_branch
      %1422 = sbr.rel (0) target = $region33
    $region32: #{tpu_custom_call.1} parent=1 // pred_region
      %1423 = dma.done [#allocation4], 2048
    $region33: #{tpu_custom_call.1} parent=1 // pred_fallthru
      _
    %1424 = vsyncpa [#allocation3], 1
    %1425 = vsyncpa [#allocation4], 1

</llo_original>
